<compile_context>
chip_gen: v5e
topology: v5e:2x2
jax: 0.10.0
libtpu: 0.0.40
codegen_flags: <defaults>
</compile_context>

<pallas_src>
import numpy as np
import jax
import jax.numpy as jnp
from jax.experimental import pallas as pl
from jax.experimental.pallas import tpu as pltpu


def _gaussian_1d(kernel_size: int, sigma: float) -> np.ndarray:
    """Separable 1-D factor: outer(a, a) == the normalised 2-D TIPS Gaussian."""
    g = np.arange(kernel_size, dtype=np.float64) - (kernel_size - 1) / 2.0
    g = np.exp(-(g ** 2) / (2.0 * float(sigma) ** 2))
    return g / g.sum()


def _tips_weights_2d(kernel_size: int, sigma: float) -> np.ndarray:
    a = _gaussian_1d(kernel_size, sigma)
    return np.outer(a, a).astype(np.float32)


def _tips_kernel(x_ref, a_ref, bd_ref, o_ref):
    # x_ref : (Hp, Bg*Wp)        Bg planes stacked along the lane axis
    # a_ref : (out_h, Hp)        separable row weights, a[p] at (i, stride*i + p)
    # bd_ref: (Bg*Wp, Bg*out_w)  block-diag column weights, b[q] at
    #                            (t*Wp + stride*j + q, t*out_w + j)
    # o_ref : (out_h, Bg*out_w)
    rows = jnp.dot(a_ref[...], x_ref[...], preferred_element_type=jnp.float32)
    # TODO(synk): the row reduction could instead use sublane-strided reads
    # (x_ref[pl.ds(p, out_h, stride=stride)]) to drop the A-matmul entirely; the
    # matmul form is kept for lowering robustness (MXU has ample headroom here).
    out = jnp.dot(rows.astype(x_ref.dtype), bd_ref[...],
                  preferred_element_type=jnp.float32)
    o_ref[...] = out.astype(o_ref.dtype)


def tips2d(x, kernel_size=2, stride=2, padding=0, sigma=0.8):
    """Pallas TIPS2d forward. x: (N, C, H, W)."""
    if kernel_size == 1 or stride == 1:
        return x

    n, c, h, w = x.shape
    if padding > 0:
        x = jnp.pad(x, ((0, 0), (0, 0), (padding, padding), (padding, padding)))
    hp, wp = h + 2 * padding, w + 2 * padding
    out_h = (hp - kernel_size) // stride + 1
    out_w = (wp - kernel_size) // stride + 1

    ab = _gaussian_1d(kernel_size, sigma)  # a == b, outer(a, b) == 2-D kernel

    # ---- choose how many (n, c) planes to stack along the lane axis --------
    p_planes = n * c
    bg = max(1, -(-128 // out_w))          # target >= 128 output lanes per step
    p_pad = -(-p_planes // bg) * bg        # pad plane count to a multiple of bg
    grid_b = p_pad // bg
    if grid_b > 1 and ((bg * wp) % 128 or (bg * out_w) % 128):
        # Interior blocks need 128-lane alignment; otherwise fall back to one
        # full-width block (always a legal block shape).
        # TODO(synk): for very large planes, H-tile the block instead so the
        # working set stays inside VMEM on v7x (64 MiB) / v5e (16 MiB scoped).
        bg, grid_b = p_pad, 1

    # ---- lane-stack the planes: (P, Hp, Wp) -> (Hp, P*Wp) ------------------
    xb = x.reshape(p_planes, hp, wp)
    if p_pad != p_planes:
        xb = jnp.concatenate(
            [xb, jnp.zeros((p_pad - p_planes, hp, wp), x.dtype)], axis=0)
    xs = jnp.transpose(xb, (1, 0, 2)).reshape(hp, p_pad * wp)

    # ---- constant weight matrices (built once on host, stored in x.dtype) --
    a_mat = np.zeros((out_h, hp), np.float64)
    for i in range(out_h):
        for p in range(kernel_size):
            a_mat[i, stride * i + p] = ab[p]
    b_col = np.zeros((wp, out_w), np.float64)
    for j in range(out_w):
        for q in range(kernel_size):
            b_col[stride * j + q, j] = ab[q]
    bd = np.zeros((bg * wp, bg * out_w), np.float64)
    for t in range(bg):
        bd[t * wp:(t + 1) * wp, t * out_w:(t + 1) * out_w] = b_col
    a_mat = jnp.asarray(a_mat, dtype=x.dtype)
    bd = jnp.asarray(bd, dtype=x.dtype)

    out = pl.pallas_call(
        _tips_kernel,
        out_shape=jax.ShapeDtypeStruct((out_h, p_pad * out_w), x.dtype),
        grid=(grid_b,),
        in_specs=[
            pl.BlockSpec((hp, bg * wp), lambda g: (0, g)),
            pl.BlockSpec((out_h, hp), lambda g: (0, 0),
                         pipeline_mode=pl.Buffered(1)),
            pl.BlockSpec((bg * wp, bg * out_w), lambda g: (0, 0),
                         pipeline_mode=pl.Buffered(1)),
        ],
        out_specs=pl.BlockSpec((out_h, bg * out_w), lambda g: (0, g)),
        compiler_params=pltpu.CompilerParams(
            dimension_semantics=("parallel",)),
    )(xs, a_mat, bd)

    # ---- un-stack: (out_h, P*out_w) -> (N, C, out_h, out_w) ----------------
    out = out.reshape(out_h, p_pad, out_w)
    out = jnp.transpose(out, (1, 0, 2))[:p_planes]
    return out.reshape(n, c, out_h, out_w)


def tips2d_reference(x, kernel_size=2, stride=2, padding=0, sigma=0.8):
    """Pure-JAX reference: depthwise strided conv with the Gaussian kernel."""
    if kernel_size == 1 or stride == 1:
        return x
    c = x.shape[1]
    w2d = jnp.asarray(_tips_weights_2d(kernel_size, sigma))
    wf = jnp.broadcast_to(w2d[None, None], (c, 1, kernel_size, kernel_size))
    return jax.lax.conv_general_dilated(
        x, wf,
        window_strides=(stride, stride),
        padding=[(padding, padding), (padding, padding)],
        dimension_numbers=("NCHW", "OIHW", "NCHW"),
        feature_group_count=c,
    )


if __name__ == "__main__":
    key = jax.random.PRNGKey(0)
    x = jax.random.normal(key, (2, 4, 16, 16), dtype=jnp.float32)

    out = tips2d(x, kernel_size=2, stride=2, padding=0, sigma=0.8)
    out = jax.block_until_ready(out)

    ref = tips2d_reference(x, kernel_size=2, stride=2, padding=0, sigma=0.8)
    assert out.shape == (2, 4, 8, 8), out.shape
    assert jnp.allclose(out, ref, atol=1e-5, rtol=1e-5), "mismatch vs reference"

    print("KERNEL_OK")
</pallas_src>

<mosaic_0001>
module attributes {stable_mosaic.version = 11 : i64} {
  func.func @_tips_kernel(%arg0: i32, %arg1: memref<16x256xf32, #tpu.memory_space<vmem>>, %arg2: memref<8x16xf32, #tpu.memory_space<vmem>>, %arg3: memref<256x128xf32, #tpu.memory_space<vmem>>, %arg4: memref<8x128xf32, #tpu.memory_space<vmem>>) attributes {dimension_semantics = [#tpu.dimension_semantics<parallel>], iteration_bounds = array<i64: 1>, scalar_prefetch = 0 : i64, scratch_operands = 0 : i64, tpu.core_type = #tpu.core_type<tc>, window_params = [{transform_indices = @transform_0, window_bounds = array<i64: 16, 256>}, {pipeline_mode = #tpu.pipeline_mode<synchronous>, transform_indices = @transform_1, window_bounds = array<i64: 8, 16>}, {pipeline_mode = #tpu.pipeline_mode<synchronous>, transform_indices = @transform_2, window_bounds = array<i64: 256, 128>}, {transform_indices = @transform_3, window_bounds = array<i64: 8, 128>}]} {
    %c0 = arith.constant 0 : index
    %c0_0 = arith.constant 0 : index
    %0 = vector.load %arg2[%c0, %c0_0] : memref<8x16xf32, #tpu.memory_space<vmem>>, vector<8x16xf32>
    %c0_1 = arith.constant 0 : index
    %c0_2 = arith.constant 0 : index
    %1 = vector.load %arg1[%c0_1, %c0_2] : memref<16x256xf32, #tpu.memory_space<vmem>>, vector<16x256xf32>
    %cst = arith.constant dense<0.000000e+00> : vector<8x256xf32>
    %2 = tpu.matmul %0, %1, %cst {dimension_numbers = #tpu.dot_dimension_numbers<[1], [0], [0], [1], [0, 0, 1, 1], [], []>} : vector<8x16xf32>, vector<16x256xf32>, vector<8x256xf32> -> vector<8x256xf32>
    %c0_3 = arith.constant 0 : index
    %c0_4 = arith.constant 0 : index
    %3 = vector.load %arg3[%c0_3, %c0_4] : memref<256x128xf32, #tpu.memory_space<vmem>>, vector<256x128xf32>
    %cst_5 = arith.constant dense<0.000000e+00> : vector<8x128xf32>
    %4 = tpu.matmul %2, %3, %cst_5 {dimension_numbers = #tpu.dot_dimension_numbers<[1], [0], [0], [1], [0, 0, 1, 1], [], []>} : vector<8x256xf32>, vector<256x128xf32>, vector<8x128xf32> -> vector<8x128xf32>
    %c0_6 = arith.constant 0 : index
    %c0_7 = arith.constant 0 : index
    %5 = vector.load %arg4[%c0_6, %c0_7] : memref<8x128xf32, #tpu.memory_space<vmem>>, vector<8x128xf32>
    tpu.vector_store %arg4[%c0_6, %c0_7], %4 {strides = array<i32>} : memref<8x128xf32, #tpu.memory_space<vmem>>, vector<8x128xf32>,
    return
  }
  func.func @transform_0(%arg0: i32) -> (i32, i32) {
    %c0_i32 = arith.constant 0 : i32
    %c0_i32_0 = arith.constant 0 : i32
    return %c0_i32, %arg0 : i32, i32
  }
  func.func @transform_1(%arg0: i32) -> (i32, i32) {
    %c0_i32 = arith.constant 0 : i32
    %c0_i32_0 = arith.constant 0 : i32
    %c0_i32_1 = arith.constant 0 : i32
    return %c0_i32, %c0_i32_0 : i32, i32
  }
  func.func @transform_2(%arg0: i32) -> (i32, i32) {
    %c0_i32 = arith.constant 0 : i32
    %c0_i32_0 = arith.constant 0 : i32
    %c0_i32_1 = arith.constant 0 : i32
    return %c0_i32, %c0_i32_0 : i32, i32
  }
  func.func @transform_3(%arg0: i32) -> (i32, i32) {
    %c0_i32 = arith.constant 0 : i32
    %c0_i32_0 = arith.constant 0 : i32
    return %c0_i32, %arg0 : i32, i32
  }
}

</mosaic_0001>

<llo_original>
// kernel: tpu_custom_call.1
$region0: #{tpu_custom_call.1}
  #allocation0 [shape = 'u32[]', space=smem, size = 0x4, offset = 0x4, fixed_abs, tag = 'smem constant byte address 0x4 - core index']
  #allocation1 [shape = 'u32[72,128]{1,0:T(1,128)}', space=vmem, size = 0x9000, scoped, tag = 'internal scratch']
  %s0 = inlined_call_operand.hbm [shape: f32[16,256], index: 0, kind: input, shape index: {}]
  %s1 = inlined_call_operand.hbm [shape: f32[8,16], index: 1, kind: input, shape index: {}]
  %s2 = inlined_call_operand.hbm [shape: f32[256,128], index: 2, kind: input, shape index: {}]
  %s3 = inlined_call_operand.hbm [shape: f32[8,128], index: 3, kind: output, shape index: {}]
  %s4 = sld [smem:[#allocation0]]
  $region34: #{tpu_custom_call.1} parent=0
    _
  %s6 = ssub.s32 1, %s4
  %s7 = scalar_select 0, %s6, %s4
  $region1: #{tpu_custom_call.1} parent=0
    #allocation2 [shape = 'u8[16384]{0}', space=vmem, size = 0x4000, scoped, tag = 'input window, operand 0, single buffered']
    #allocation3 [shape = 's32[1]{0}', space=sflag, size = 0x4, scoped, tag = 'scoped memory for tpu_custom_call.1']
    #allocation4 [shape = 's32[1]{0}', space=sflag, size = 0x4, scoped, tag = 'scoped memory for tpu_custom_call.1']
    #allocation5 [shape = 'u8[4096]{0}', space=vmem, size = 0x1000, scoped, tag = 'input window, operand 1, single buffered']
    #allocation6 [shape = 's32[1]{0}', space=sflag, size = 0x4, scoped, tag = 'scoped memory for tpu_custom_call.1']
    #allocation7 [shape = 'u8[131072]{0}', space=vmem, size = 0x20000, scoped, tag = 'input window, operand 2, single buffered']
    #allocation8 [shape = 'u8[4096]{0}', space=vmem, size = 0x1000, scoped, tag = 'output window, operand 0, single buffered']
    %8 = vsyncpa [#allocation3], 0
    %9 = vsyncpa [#allocation6], 0
    %10 = vsyncpa [#allocation4], 0
    // Predicated region
    $region2: #{tpu_custom_call.1} parent=1 // pred_check
      _
    $region3: #{tpu_custom_call.1} parent=1 // pred_check_branch
      %12 = sbr.rel (0) target = $region5
    $region4: #{tpu_custom_call.1} parent=1 // pred_region
      %14 = vsyncadd [#allocation3], 0
      %s15 = sshll.u32 %s0, 4
      %s16 = int_to_ptr.hbm [resolvable:$true] %s15
      %s17 = sshll.u32 [#allocation2], 4
      %s18 = int_to_ptr.vmem [resolvable:$true] %s17
      %23 = dma.hbm_to_vmem [thread:$0]  %s16, 512, %s18, [#allocation3], 256, 256, 16
    $region5: #{tpu_custom_call.1} parent=1 // pred_fallthru
      _
    // Predicated region
    $region6: #{tpu_custom_call.1} parent=1 // pred_check
      _
    $region7: #{tpu_custom_call.1} parent=1 // pred_check_branch
      %25 = sbr.rel (0) target = $region9
    $region8: #{tpu_custom_call.1} parent=1 // pred_region
      %27 = vsyncadd [#allocation6], 0
      %s29 = sshll.u32 %s1, 4
      %s30 = int_to_ptr.hbm [resolvable:$true] %s29
      %s31 = sshll.u32 [#allocation5], 4
      %s32 = int_to_ptr.vmem [resolvable:$true] %s31
      %34 = dma.hbm_to_vmem [thread:$0]  %s30, 128, %s32, [#allocation6]
    $region9: #{tpu_custom_call.1} parent=1 // pred_fallthru
      _
    // Predicated region
    $region10: #{tpu_custom_call.1} parent=1 // pred_check
      _
    $region11: #{tpu_custom_call.1} parent=1 // pred_check_branch
      %36 = sbr.rel (0) target = $region13
    $region12: #{tpu_custom_call.1} parent=1 // pred_region
      %38 = vsyncadd [#allocation6], 0
      %s39 = sshll.u32 %s2, 4
      %s40 = int_to_ptr.hbm [resolvable:$true] %s39
      %s41 = sshll.u32 [#allocation7], 4
      %s42 = int_to_ptr.vmem [resolvable:$true] %s41
      %47 = dma.hbm_to_vmem [thread:$0]  %s40, 4096, %s42, [#allocation6], 128, 128, 8
    $region13: #{tpu_custom_call.1} parent=1 // pred_fallthru
      _
    // Predicated region
    $region14: #{tpu_custom_call.1} parent=1 // pred_check
      _
    $region15: #{tpu_custom_call.1} parent=1 // pred_check_branch
      %49 = sbr.rel (0) target = $region17
    $region16: #{tpu_custom_call.1} parent=1 // pred_region
      %51 = dma.done [#allocation3], 512
    $region17: #{tpu_custom_call.1} parent=1 // pred_fallthru
      _
    // Predicated region
    $region18: #{tpu_custom_call.1} parent=1 // pred_check
      _
    $region19: #{tpu_custom_call.1} parent=1 // pred_check_branch
      %53 = sbr.rel (0) target = $region21
    $region20: #{tpu_custom_call.1} parent=1 // pred_region
      %55 = dma.done [#allocation6], 128
    $region21: #{tpu_custom_call.1} parent=1 // pred_fallthru
      _
    // Predicated region
    $region22: #{tpu_custom_call.1} parent=1 // pred_check
      _
    $region23: #{tpu_custom_call.1} parent=1 // pred_check_branch
      %57 = sbr.rel (0) target = $region25
    $region24: #{tpu_custom_call.1} parent=1 // pred_region
      %59 = dma.done [#allocation6], 4096
    $region25: #{tpu_custom_call.1} parent=1 // pred_fallthru
      _
    %v60 = vld [vmem:[#allocation5] sm:$0xff]
    %v61 = vld [vmem:[#allocation2] sm:$0xff]
    %v62 = vld [vmem:[#allocation2 + $0x8] sm:$0xff]
    %v63 = vld [vmem:[#allocation2 + $0x10] sm:$0xff]
    %v64 = vld [vmem:[#allocation2 + $0x18] sm:$0xff]
    %vm65 = vcmask 130048
    %v67 = vsel %vm65, %v60, 0
    %69 = vmatpush.msra.mxu0 0.0
    %70 = vmatpush.msra.mxu0 0.0
    %71 = vmatpush.msra.mxu0 0.0
    %72 = vmatpush.msra.mxu0 0.0
    %73 = vmatpush.msra.mxu0 0.0
    %74 = vmatpush.msra.mxu0 0.0
    %75 = vmatpush.msra.mxu0 0.0
    %76 = vmatpush.msra.mxu0 0.0
    %77 = vmatpush.msra.mxu0 0.0
    %78 = vmatpush.msra.mxu0 0.0
    %79 = vmatpush.msra.mxu0 0.0
    %80 = vmatpush.msra.mxu0 0.0
    %81 = vmatpush.msra.mxu0 0.0
    %82 = vmatpush.msra.mxu0 0.0
    %83 = vmatpush.msra.mxu0 %v63
    %84 = vmatpush.msra.mxu0 %v61
    %85 = vmatmul.f32.gmra.mxu0 %v67
    %v86 = vpop.f32.mrf.mxu0
    %v87 = vadd.f32 0.0, %v86
    %88 = vdwg.mxu0
    %89 = vmatpush.msra.mxu0 0.0
    %90 = vmatpush.msra.mxu0 0.0
    %91 = vmatpush.msra.mxu0 0.0
    %92 = vmatpush.msra.mxu0 0.0
    %93 = vmatpush.msra.mxu0 0.0
    %94 = vmatpush.msra.mxu0 0.0
    %95 = vmatpush.msra.mxu0 0.0
    %96 = vmatpush.msra.mxu0 0.0
    %97 = vmatpush.msra.mxu0 0.0
    %98 = vmatpush.msra.mxu0 0.0
    %99 = vmatpush.msra.mxu0 0.0
    %100 = vmatpush.msra.mxu0 0.0
    %101 = vmatpush.msra.mxu0 0.0
    %102 = vmatpush.msra.mxu0 0.0
    %103 = vmatpush.msra.mxu0 %v64
    %104 = vmatpush.msra.mxu0 %v62
    %105 = vmatmul.f32.gmra.mxu0 %v67
    %v106 = vpop.f32.mrf.mxu0
    %v107 = vadd.f32 0.0, %v106
    %108 = vdwg.mxu0
    %v109 = vld [vmem:[#allocation7] sm:$0xff]
    %v110 = vld [vmem:[#allocation7 + $0x8] sm:$0xff]
    %v111 = vld [vmem:[#allocation7 + $0x10] sm:$0xff]
    %v112 = vld [vmem:[#allocation7 + $0x18] sm:$0xff]
    %v113 = vld [vmem:[#allocation7 + $0x20] sm:$0xff]
    %v114 = vld [vmem:[#allocation7 + $0x28] sm:$0xff]
    %v115 = vld [vmem:[#allocation7 + $0x30] sm:$0xff]
    %v116 = vld [vmem:[#allocation7 + $0x38] sm:$0xff]
    %v117 = vld [vmem:[#allocation7 + $0x40] sm:$0xff]
    %v118 = vld [vmem:[#allocation7 + $0x48] sm:$0xff]
    %v119 = vld [vmem:[#allocation7 + $0x50] sm:$0xff]
    %v120 = vld [vmem:[#allocation7 + $0x58] sm:$0xff]
    %v121 = vld [vmem:[#allocation7 + $0x60] sm:$0xff]
    %v122 = vld [vmem:[#allocation7 + $0x68] sm:$0xff]
    %v123 = vld [vmem:[#allocation7 + $0x70] sm:$0xff]
    %v124 = vld [vmem:[#allocation7 + $0x78] sm:$0xff]
    %v125 = vld [vmem:[#allocation7 + $0x80] sm:$0xff]
    %v126 = vld [vmem:[#allocation7 + $0x88] sm:$0xff]
    %v127 = vld [vmem:[#allocation7 + $0x90] sm:$0xff]
    %v128 = vld [vmem:[#allocation7 + $0x98] sm:$0xff]
    %v129 = vld [vmem:[#allocation7 + $0xa0] sm:$0xff]
    %v130 = vld [vmem:[#allocation7 + $0xa8] sm:$0xff]
    %v131 = vld [vmem:[#allocation7 + $0xb0] sm:$0xff]
    %v132 = vld [vmem:[#allocation7 + $0xb8] sm:$0xff]
    %v133 = vld [vmem:[#allocation7 + $0xc0] sm:$0xff]
    %v134 = vld [vmem:[#allocation7 + $0xc8] sm:$0xff]
    %v135 = vld [vmem:[#allocation7 + $0xd0] sm:$0xff]
    %v136 = vld [vmem:[#allocation7 + $0xd8] sm:$0xff]
    %v137 = vld [vmem:[#allocation7 + $0xe0] sm:$0xff]
    %v138 = vld [vmem:[#allocation7 + $0xe8] sm:$0xff]
    %v139 = vld [vmem:[#allocation7 + $0xf0] sm:$0xff]
    %v140 = vld [vmem:[#allocation7 + $0xf8] sm:$0xff]
    %141 = vmatpush.msra.mxu0 %v124
    %142 = vmatpush.msra.mxu0 %v123
    %143 = vmatpush.msra.mxu0 %v122
    %144 = vmatpush.msra.mxu0 %v121
    %145 = vmatpush.msra.mxu0 %v120
    %146 = vmatpush.msra.mxu0 %v119
    %147 = vmatpush.msra.mxu0 %v118
    %148 = vmatpush.msra.mxu0 %v117
    %149 = vmatpush.msra.mxu0 %v116
    %150 = vmatpush.msra.mxu0 %v115
    %151 = vmatpush.msra.mxu0 %v114
    %152 = vmatpush.msra.mxu0 %v113
    %153 = vmatpush.msra.mxu0 %v112
    %154 = vmatpush.msra.mxu0 %v111
    %155 = vmatpush.msra.mxu0 %v110
    %156 = vmatpush.msra.mxu0 %v109
    %157 = vmatmul.f32.gmra.mxu0 %v87
    %v158 = vpop.f32.mrf.mxu0
    %v159 = vadd.f32 0.0, %v158
    %160 = vdwg.mxu0
    %161 = vmatpush.msra.mxu0 %v140
    %162 = vmatpush.msra.mxu0 %v139
    %163 = vmatpush.msra.mxu0 %v138
    %164 = vmatpush.msra.mxu0 %v137
    %165 = vmatpush.msra.mxu0 %v136
    %166 = vmatpush.msra.mxu0 %v135
    %167 = vmatpush.msra.mxu0 %v134
    %168 = vmatpush.msra.mxu0 %v133
    %169 = vmatpush.msra.mxu0 %v132
    %170 = vmatpush.msra.mxu0 %v131
    %171 = vmatpush.msra.mxu0 %v130
    %172 = vmatpush.msra.mxu0 %v129
    %173 = vmatpush.msra.mxu0 %v128
    %174 = vmatpush.msra.mxu0 %v127
    %175 = vmatpush.msra.mxu0 %v126
    %176 = vmatpush.msra.mxu0 %v125
    %177 = vmatmul.f32.gmra.mxu0 %v107
    %v178 = vpop.f32.mrf.mxu0
    %v179 = vadd.f32 %v159, %v178
    %180 = vdwg.mxu0
    %181 = vst [vmem:[#allocation8] sm:$0xff] %v179
    // Predicated region
    $region26: #{tpu_custom_call.1} parent=1 // pred_check
      _
    $region27: #{tpu_custom_call.1} parent=1 // pred_check_branch
      %183 = sbr.rel (0) target = $region29
    $region28: #{tpu_custom_call.1} parent=1 // pred_region
      %185 = vsyncadd [#allocation4], 0
      %s187 = sshll.u32 [#allocation8], 4
      %s188 = int_to_ptr.vmem [resolvable:$true] %s187
      %s189 = sshll.u32 %s3, 4
      %s190 = int_to_ptr.hbm [resolvable:$true] %s189
      %192 = dma.vmem_to_hbm [thread:$0]  %s188, 128, %s190, [#allocation4]
    $region29: #{tpu_custom_call.1} parent=1 // pred_fallthru
      _
    // Predicated region
    $region30: #{tpu_custom_call.1} parent=1 // pred_check
      _
    $region31: #{tpu_custom_call.1} parent=1 // pred_check_branch
      %194 = sbr.rel (0) target = $region33
    $region32: #{tpu_custom_call.1} parent=1 // pred_region
      %196 = dma.done [#allocation4], 128
    $region33: #{tpu_custom_call.1} parent=1 // pred_fallthru
      _
    %197 = vsyncpa [#allocation3], 1
    %198 = vsyncpa [#allocation6], 1
    %199 = vsyncpa [#allocation4], 1

</llo_original>
